<compile_context>
chip_gen: v7x
topology: tpu7x:2x2x1
jax: 0.10.0
libtpu: 0.0.40
codegen_flags: <defaults>
</compile_context>

<pallas_src>
import jax
import jax.numpy as jnp
from jax.experimental import pallas as pl
from jax.experimental.pallas import tpu as pltpu


# ----------------------------------------------------------------------------
# Fused kernel (single invocation, everything resident in VMEM):
#   onehot_lo/hi = iota(B,T) == lo/hi                 (VPU)
#   low/high     = onehot @ table                     (MXU, tiny)
#   x            = low + (high - low) * frac          (f32)
#   h            = silu(x @ w1 + b1)                  (bf16 MXU, f32 accum)
#   out          = silu(h @ w2 + b2)                  (bf16 MXU, f32 accum)
# ----------------------------------------------------------------------------
def _fused_kernel(lo_ref, hi_ref, frac_ref, table_ref, w1_ref, b1_ref,
                  w2_ref, b2_ref, o_ref):
    batch = lo_ref.shape[0]
    t_pad = table_ref.shape[0]

    ids = jax.lax.broadcasted_iota(jnp.int32, (batch, t_pad), 1)
    onehot_lo = (ids == lo_ref[...]).astype(jnp.float32)            # (B, T_pad)
    onehot_hi = (ids == hi_ref[...]).astype(jnp.float32)

    low = jnp.dot(onehot_lo, table_ref[...],
                  preferred_element_type=jnp.float32)               # (B, 128)
    high = jnp.dot(onehot_hi, table_ref[...],
                   preferred_element_type=jnp.float32)
    x = low + (high - low) * frac_ref[...]                          # f32 lerp

    h = jnp.dot(x.astype(jnp.bfloat16), w1_ref[...],
                preferred_element_type=jnp.float32) + b1_ref[...]
    h = h * jax.nn.sigmoid(h)                                       # silu, f32

    o = jnp.dot(h.astype(jnp.bfloat16), w2_ref[...],
                preferred_element_type=jnp.float32) + b2_ref[...]
    o_ref[...] = o * jax.nn.sigmoid(o)                              # silu, f32


def _run_fused(lo, hi, frac, table, w1, b1, w2, b2):
    batch_pad = lo.shape[0]
    t_pad, d_in = table.shape            # (T_pad, 128)
    d_out = w2.shape[1]                  # 512

    flops = 2 * batch_pad * (2 * t_pad * d_in            # one-hot gathers
                             + d_in * w1.shape[1]        # projection 1
                             + w2.shape[0] * d_out)      # projection 2
    bytes_accessed = (w1.size * w1.dtype.itemsize + w2.size * w2.dtype.itemsize
                      + (b1.size + b2.size) * 4
                      + table.size * 4
                      + (lo.size + hi.size + frac.size) * 4
                      + batch_pad * d_out * 4)
    cost = pl.CostEstimate(flops=flops,
                           transcendentals=batch_pad * (w1.shape[1] + d_out),
                           bytes_accessed=bytes_accessed)

    vmem = pl.BlockSpec(memory_space=pltpu.MemorySpace.VMEM)
    return pl.pallas_call(
        _fused_kernel,
        out_shape=jax.ShapeDtypeStruct((batch_pad, d_out), jnp.float32),
        in_specs=[vmem] * 8,
        out_specs=vmem,
        cost_estimate=cost,
    )(lo, hi, frac, table, w1, b1, w2, b2)


# ----------------------------------------------------------------------------
# Module-equivalent wrapper (embedding table + index/lerp scalar prep + kernel)
# ----------------------------------------------------------------------------
def build_embedding(max_steps):
    steps = jnp.arange(max_steps, dtype=jnp.float32)[:, None]         # [T, 1]
    dims = jnp.arange(64, dtype=jnp.float32)[None, :]                 # [1, 64]
    table = steps * 10.0 ** (dims * 4.0 / 63.0)                       # [T, 64]
    return jnp.concatenate([jnp.sin(table), jnp.cos(table)], axis=1)  # [T, 128]


def init_params(key):
    """f32 parameters with torch nn.Linear-style init (same shapes)."""
    k1, k2, k3, k4 = jax.random.split(key, 4)
    lim1 = 1.0 / jnp.sqrt(128.0)
    lim2 = 1.0 / jnp.sqrt(512.0)
    w1 = jax.random.uniform(k1, (128, 512), jnp.float32, -lim1, lim1)
    b1 = jax.random.uniform(k2, (1, 512), jnp.float32, -lim1, lim1)
    w2 = jax.random.uniform(k3, (512, 512), jnp.float32, -lim2, lim2)
    b2 = jax.random.uniform(k4, (1, 512), jnp.float32, -lim2, lim2)
    return w1, b1, w2, b2


def to_kernel_params(params_f32):
    """bf16 weight storage (halves HBM traffic); biases stay f32."""
    w1, b1, w2, b2 = params_f32
    return (w1.astype(jnp.bfloat16), b1, w2.astype(jnp.bfloat16), b2)


def diffusion_embedding_forward(diffusion_step, embedding, params):
    """Mirrors DiffusionEmbedding.forward.  Returns [B, 512] float32."""
    w1, b1, w2, b2 = params
    T = embedding.shape[0]
    B = diffusion_step.shape[0]

    if jnp.issubdtype(diffusion_step.dtype, jnp.integer):
        lo = jnp.clip(diffusion_step.astype(jnp.int32), 0, T - 1)
        hi = lo
        frac = jnp.zeros((B,), jnp.float32)
    else:
        # NOTE: indices are clamped (PyTorch would index-error out of range).
        t = diffusion_step.astype(jnp.float32)
        lo_f = jnp.floor(t)
        lo = jnp.clip(lo_f, 0, T - 1).astype(jnp.int32)
        hi = jnp.clip(jnp.ceil(t), 0, T - 1).astype(jnp.int32)
        frac = t - lo_f

    # Pad batch to a sublane multiple (8 rows for f32).  Padded rows read
    # table row 0 with frac 0 and are sliced off below.
    batch_pad = max(8, -(-B // 8) * 8)
    pad = batch_pad - B
    lo = jnp.pad(lo, (0, pad)).reshape(batch_pad, 1)
    hi = jnp.pad(hi, (0, pad)).reshape(batch_pad, 1)
    frac = jnp.pad(frac, (0, pad)).reshape(batch_pad, 1)

    # Keep table 2-D; pad rows to a multiple of 8 so the one-hot matmul's
    # contraction dim is sublane-aligned.  Padded rows are never selected.
    t_pad = -(-T // 8) * 8
    table = jnp.pad(embedding.astype(jnp.float32), ((0, t_pad - T), (0, 0)))

    out = _run_fused(lo, hi, frac, table, w1, b1, w2, b2)
    return out[:B]


# ----------------------------------------------------------------------------
# Pure-JAX reference (mimics the kernel's bf16 operand rounding when given
# bf16 weights; full f32 when given f32 weights).
# ----------------------------------------------------------------------------
def _reference(diffusion_step, embedding, w1, b1, w2, b2):
    T = embedding.shape[0]
    if jnp.issubdtype(diffusion_step.dtype, jnp.integer):
        x = embedding[jnp.clip(diffusion_step, 0, T - 1)]
    else:
        t = diffusion_step.astype(jnp.float32)
        lo_f = jnp.floor(t)
        low = embedding[jnp.clip(lo_f, 0, T - 1).astype(jnp.int32)]
        high = embedding[jnp.clip(jnp.ceil(t), 0, T - 1).astype(jnp.int32)]
        x = low + (high - low) * (t - lo_f)[:, None]
    x = x.astype(jnp.float32)
    h = x.astype(w1.dtype).astype(jnp.float32) @ w1.astype(jnp.float32) + b1
    h = h * jax.nn.sigmoid(h)
    o = h.astype(w2.dtype).astype(jnp.float32) @ w2.astype(jnp.float32) + b2
    return o * jax.nn.sigmoid(o)


if __name__ == "__main__":
    key = jax.random.PRNGKey(0)
    max_steps = 50
    embedding = build_embedding(max_steps)              # [50, 128] f32
    params_f32 = init_params(key)
    params = to_kernel_params(params_f32)               # bf16 weights, f32 biases

    # Integer diffusion steps (table-lookup path), batch = 2.
    step_int = jnp.array([3, 17], dtype=jnp.int32)
    out = jax.block_until_ready(
        diffusion_embedding_forward(step_int, embedding, params))
    assert out.shape == (2, 512)

    ref_matched = _reference(step_int, embedding, *params)       # bf16-matched
    assert jnp.allclose(out, ref_matched, atol=1e-2, rtol=1e-2), "int path mismatch"

    ref_f32 = _reference(step_int, embedding, *params_f32)       # full f32
    assert jnp.allclose(out, ref_f32, atol=5e-2, rtol=5e-2), "int path f32 drift"

    # Float diffusion steps (lerp path), batch = 2.
    t_float = jnp.array([3.25, 16.75], dtype=jnp.float32)
    out_f = jax.block_until_ready(
        diffusion_embedding_forward(t_float, embedding, params))
    assert out_f.shape == (2, 512)
    ref_f = _reference(t_float, embedding, *params)
    assert jnp.allclose(out_f, ref_f, atol=1e-2, rtol=1e-2), "lerp path mismatch"

    print("KERNEL_OK")
</pallas_src>

<mosaic_0001>
module attributes {stable_mosaic.version = 11 : i64} {
  func.func @_fused_kernel(%arg0: memref<8x1xi32, #tpu.memory_space<vmem>>, %arg1: memref<8x1xi32, #tpu.memory_space<vmem>>, %arg2: memref<8x1xf32, #tpu.memory_space<vmem>>, %arg3: memref<56x128xf32, #tpu.memory_space<vmem>>, %arg4: memref<128x512xbf16, #tpu.memory_space<vmem>>, %arg5: memref<1x512xf32, #tpu.memory_space<vmem>>, %arg6: memref<512x512xbf16, #tpu.memory_space<vmem>>, %arg7: memref<1x512xf32, #tpu.memory_space<vmem>>, %arg8: memref<8x512xf32, #tpu.memory_space<vmem>>) attributes {dimension_semantics = [], scalar_prefetch = 0 : i64, scratch_operands = 0 : i64, tpu.core_type = #tpu.core_type<tc>} {
    %0 = tpu.iota {dimensions = array<i32: 1>} : vector<8x56xi32>
    %c0 = arith.constant 0 : index
    %c0_0 = arith.constant 0 : index
    %1 = vector.load %arg0[%c0, %c0_0] : memref<8x1xi32, #tpu.memory_space<vmem>>, vector<8x1xi32>
    %2 = vector.broadcast %1 : vector<8x1xi32> to vector<8x56xi32>
    %3 = arith.cmpi eq, %0, %2 : vector<8x56xi32>
    %4 = arith.extui %3 : vector<8x56xi1> to vector<8x56xi32>
    %5 = arith.sitofp %4 : vector<8x56xi32> to vector<8x56xf32>
    %c0_1 = arith.constant 0 : index
    %c0_2 = arith.constant 0 : index
    %6 = vector.load %arg1[%c0_1, %c0_2] : memref<8x1xi32, #tpu.memory_space<vmem>>, vector<8x1xi32>
    %7 = vector.broadcast %6 : vector<8x1xi32> to vector<8x56xi32>
    %8 = arith.cmpi eq, %0, %7 : vector<8x56xi32>
    %9 = arith.extui %8 : vector<8x56xi1> to vector<8x56xi32>
    %10 = arith.sitofp %9 : vector<8x56xi32> to vector<8x56xf32>
    %c0_3 = arith.constant 0 : index
    %c0_4 = arith.constant 0 : index
    %11 = vector.load %arg3[%c0_3, %c0_4] : memref<56x128xf32, #tpu.memory_space<vmem>>, vector<56x128xf32>
    %cst = arith.constant dense<0.000000e+00> : vector<8x128xf32>
    %12 = tpu.matmul %5, %11, %cst {dimension_numbers = #tpu.dot_dimension_numbers<[1], [0], [0], [1], [0, 0, 1, 1], [], []>} : vector<8x56xf32>, vector<56x128xf32>, vector<8x128xf32> -> vector<8x128xf32>
    %c0_5 = arith.constant 0 : index
    %c0_6 = arith.constant 0 : index
    %13 = vector.load %arg3[%c0_5, %c0_6] : memref<56x128xf32, #tpu.memory_space<vmem>>, vector<56x128xf32>
    %cst_7 = arith.constant dense<0.000000e+00> : vector<8x128xf32>
    %14 = tpu.matmul %10, %13, %cst_7 {dimension_numbers = #tpu.dot_dimension_numbers<[1], [0], [0], [1], [0, 0, 1, 1], [], []>} : vector<8x56xf32>, vector<56x128xf32>, vector<8x128xf32> -> vector<8x128xf32>
    %15 = arith.subf %14, %12 : vector<8x128xf32>
    %c0_8 = arith.constant 0 : index
    %c0_9 = arith.constant 0 : index
    %16 = vector.load %arg2[%c0_8, %c0_9] : memref<8x1xf32, #tpu.memory_space<vmem>>, vector<8x1xf32>
    %17 = vector.broadcast %16 : vector<8x1xf32> to vector<8x128xf32>
    %18 = arith.mulf %15, %17 : vector<8x128xf32>
    %19 = arith.addf %12, %18 : vector<8x128xf32>
    %20 = arith.truncf %19 : vector<8x128xf32> to vector<8x128xbf16>
    %c0_10 = arith.constant 0 : index
    %c0_11 = arith.constant 0 : index
    %21 = vector.load %arg4[%c0_10, %c0_11] : memref<128x512xbf16, #tpu.memory_space<vmem>>, vector<128x512xbf16>
    %cst_12 = arith.constant dense<0.000000e+00> : vector<8x512xf32>
    %22 = tpu.matmul %20, %21, %cst_12 {dimension_numbers = #tpu.dot_dimension_numbers<[1], [0], [0], [1], [0, 0, 1, 1], [], []>} : vector<8x128xbf16>, vector<128x512xbf16>, vector<8x512xf32> -> vector<8x512xf32>
    %c0_13 = arith.constant 0 : index
    %c0_14 = arith.constant 0 : index
    %23 = vector.load %arg5[%c0_13, %c0_14] : memref<1x512xf32, #tpu.memory_space<vmem>>, vector<1x512xf32>
    %24 = vector.broadcast %23 : vector<1x512xf32> to vector<8x512xf32>
    %25 = arith.addf %22, %24 : vector<8x512xf32>
    %26 = arith.negf %25 : vector<8x512xf32>
    %27 = math.exp %26 : vector<8x512xf32>
    %cst_15 = arith.constant 1.000000e+00 : f32
    %28 = vector.broadcast %cst_15 : f32 to vector<8x512xf32>
    %29 = arith.addf %28, %27 : vector<8x512xf32>
    %30 = arith.divf %28, %29 : vector<8x512xf32>
    %31 = arith.mulf %25, %30 : vector<8x512xf32>
    %32 = arith.truncf %31 : vector<8x512xf32> to vector<8x512xbf16>
    %c0_16 = arith.constant 0 : index
    %c0_17 = arith.constant 0 : index
    %33 = vector.load %arg6[%c0_16, %c0_17] : memref<512x512xbf16, #tpu.memory_space<vmem>>, vector<512x512xbf16>
    %cst_18 = arith.constant dense<0.000000e+00> : vector<8x512xf32>
    %34 = tpu.matmul %32, %33, %cst_18 {dimension_numbers = #tpu.dot_dimension_numbers<[1], [0], [0], [1], [0, 0, 1, 1], [], []>} : vector<8x512xbf16>, vector<512x512xbf16>, vector<8x512xf32> -> vector<8x512xf32>
    %c0_19 = arith.constant 0 : index
    %c0_20 = arith.constant 0 : index
    %35 = vector.load %arg7[%c0_19, %c0_20] : memref<1x512xf32, #tpu.memory_space<vmem>>, vector<1x512xf32>
    %36 = vector.broadcast %35 : vector<1x512xf32> to vector<8x512xf32>
    %37 = arith.addf %34, %36 : vector<8x512xf32>
    %38 = arith.negf %37 : vector<8x512xf32>
    %39 = math.exp %38 : vector<8x512xf32>
    %cst_21 = arith.constant 1.000000e+00 : f32
    %40 = vector.broadcast %cst_21 : f32 to vector<8x512xf32>
    %41 = arith.addf %40, %39 : vector<8x512xf32>
    %42 = arith.divf %40, %41 : vector<8x512xf32>
    %43 = arith.mulf %37, %42 : vector<8x512xf32>
    %c0_22 = arith.constant 0 : index
    %c0_23 = arith.constant 0 : index
    %44 = vector.load %arg8[%c0_22, %c0_23] : memref<8x512xf32, #tpu.memory_space<vmem>>, vector<8x512xf32>
    tpu.vector_store %arg8[%c0_22, %c0_23], %43 {strides = array<i32>} : memref<8x512xf32, #tpu.memory_space<vmem>>, vector<8x512xf32>,
    return
  }
}

</mosaic_0001>

<llo_original>
// kernel: tpu_custom_call.1
$region0: #{tpu_custom_call.1}
  #allocation0 [shape = 'u32[]', space=smem, size = 0x4, offset = 0x4, fixed_abs, tag = 'smem constant byte address 0x4 - core index']
  #allocation1 [shape = 'u32[144,128]{1,0:T(1,128)}', space=vmem, size = 0x12000, scoped, tag = 'internal scratch']
  %s0 = inlined_call_operand.vmem [shape: s32[8,1], index: 0, kind: input, shape index: {}]
  %s1 = inlined_call_operand.vmem [shape: s32[8,1], index: 1, kind: input, shape index: {}]
  %s2 = inlined_call_operand.vmem [shape: f32[8,1], index: 2, kind: input, shape index: {}]
  %s3 = inlined_call_operand.hbm [shape: f32[56,128], index: 3, kind: input, shape index: {}]
  %s4 = inlined_call_operand.hbm [shape: bf16[128,512], index: 4, kind: input, shape index: {}]
  %s5 = inlined_call_operand.vmem [shape: f32[1,512], index: 5, kind: input, shape index: {}]
  %s6 = inlined_call_operand.hbm [shape: bf16[512,512], index: 6, kind: input, shape index: {}]
  %s7 = inlined_call_operand.vmem [shape: f32[1,512], index: 7, kind: input, shape index: {}]
  %s8 = inlined_call_operand.hbm [shape: f32[8,512], index: 8, kind: output, shape index: {}]
  %s9 = sld [smem:[#allocation0]]
  $region54: #{tpu_custom_call.1} parent=0
    _
  %s11 = ssub.s32 1, %s9
  %s12 = scalar_select 0, %s11, %s9
  $region1: #{tpu_custom_call.1} parent=0
    #allocation2 [shape = 'u8[28672]{0}', space=vmem, size = 0x7000, scoped, tag = 'input window, operand 3, single buffered']
    #allocation3 [shape = 's32[1]{0}', space=sflag, size = 0x4, scoped, tag = 'scoped memory for tpu_custom_call.1']
    #allocation4 [shape = 's32[1]{0}', space=sflag, size = 0x4, scoped, tag = 'scoped memory for tpu_custom_call.1']
    #allocation5 [shape = 'u8[131072]{0}', space=vmem, size = 0x20000, scoped, tag = 'input window, operand 4, single buffered']
    #allocation6 [shape = 's32[1]{0}', space=sflag, size = 0x4, scoped, tag = 'scoped memory for tpu_custom_call.1']
    #allocation7 [shape = 'u8[524288]{0}', space=vmem, size = 0x80000, scoped, tag = 'input window, operand 6, single buffered']
    #allocation8 [shape = 'u8[16384]{0}', space=vmem, size = 0x4000, scoped, tag = 'output window, operand 0, single buffered']
    %13 = vsyncpa [#allocation3], 0
    %14 = vsyncpa [#allocation6], 0
    %15 = vsyncpa [#allocation4], 0
    // Predicated region
    $region2: #{tpu_custom_call.1} parent=1 // pred_check
      _
    $region3: #{tpu_custom_call.1} parent=1 // pred_check_branch
      %17 = sbr.rel (0) target = $region5
    $region4: #{tpu_custom_call.1} parent=1 // pred_region
      _
    $region5: #{tpu_custom_call.1} parent=1 // pred_fallthru
      _
    // Predicated region
    $region6: #{tpu_custom_call.1} parent=1 // pred_check
      _
    $region7: #{tpu_custom_call.1} parent=1 // pred_check_branch
      %19 = sbr.rel (0) target = $region9
    $region8: #{tpu_custom_call.1} parent=1 // pred_region
      _
    $region9: #{tpu_custom_call.1} parent=1 // pred_fallthru
      _
    // Predicated region
    $region10: #{tpu_custom_call.1} parent=1 // pred_check
      _
    $region11: #{tpu_custom_call.1} parent=1 // pred_check_branch
      %21 = sbr.rel (0) target = $region13
    $region12: #{tpu_custom_call.1} parent=1 // pred_region
      _
    $region13: #{tpu_custom_call.1} parent=1 // pred_fallthru
      _
    // Predicated region
    $region14: #{tpu_custom_call.1} parent=1 // pred_check
      _
    $region15: #{tpu_custom_call.1} parent=1 // pred_check_branch
      %23 = sbr.rel (0) target = $region17
    $region16: #{tpu_custom_call.1} parent=1 // pred_region
      %s25 = ssub.s32 896, 896
      %26 = vsyncadd [#allocation3], %s25
      %s27 = sshll.u32 [#allocation2], 4
      %s28 = int_to_ptr.vmem [resolvable:$true] %s27
      %33 = dma.hbm_to_vmem [thread:$0]  %s3, 896, %s28, [#allocation3], 128, 128, 8
    $region17: #{tpu_custom_call.1} parent=1 // pred_fallthru
      _
    // Predicated region
    $region18: #{tpu_custom_call.1} parent=1 // pred_check
      _
    $region19: #{tpu_custom_call.1} parent=1 // pred_check_branch
      %35 = sbr.rel (0) target = $region21
    $region20: #{tpu_custom_call.1} parent=1 // pred_region
      %s37 = ssub.s32 4096, 4096
      %38 = vsyncadd [#allocation6], %s37
      %s39 = sshll.u32 [#allocation5], 4
      %s40 = int_to_ptr.vmem [resolvable:$true] %s39
      %45 = dma.hbm_to_vmem [thread:$0]  %s4, 4096, %s40, [#allocation6], 256, 256, 16
    $region21: #{tpu_custom_call.1} parent=1 // pred_fallthru
      _
    // Predicated region
    $region22: #{tpu_custom_call.1} parent=1 // pred_check
      _
    $region23: #{tpu_custom_call.1} parent=1 // pred_check_branch
      %47 = sbr.rel (0) target = $region25
    $region24: #{tpu_custom_call.1} parent=1 // pred_region
      _
    $region25: #{tpu_custom_call.1} parent=1 // pred_fallthru
      _
    // Predicated region
    $region26: #{tpu_custom_call.1} parent=1 // pred_check
      _
    $region27: #{tpu_custom_call.1} parent=1 // pred_check_branch
      %49 = sbr.rel (0) target = $region29
    $region28: #{tpu_custom_call.1} parent=1 // pred_region
      %s51 = ssub.s32 16384, 16384
      %52 = vsyncadd [#allocation6], %s51
      %s53 = sshll.u32 [#allocation7], 4
      %s54 = int_to_ptr.vmem [resolvable:$true] %s53
      %59 = dma.hbm_to_vmem [thread:$0]  %s6, 16384, %s54, [#allocation6], 256, 256, 16
    $region29: #{tpu_custom_call.1} parent=1 // pred_fallthru
      _
    // Predicated region
    $region30: #{tpu_custom_call.1} parent=1 // pred_check
      _
    $region31: #{tpu_custom_call.1} parent=1 // pred_check_branch
      %61 = sbr.rel (0) target = $region33
    $region32: #{tpu_custom_call.1} parent=1 // pred_region
      _
    $region33: #{tpu_custom_call.1} parent=1 // pred_fallthru
      _
    // Predicated region
    $region34: #{tpu_custom_call.1} parent=1 // pred_check
      _
    $region35: #{tpu_custom_call.1} parent=1 // pred_check_branch
      %63 = sbr.rel (0) target = $region37
    $region36: #{tpu_custom_call.1} parent=1 // pred_region
      %64 = dma.done [#allocation3], 896
    $region37: #{tpu_custom_call.1} parent=1 // pred_fallthru
      _
    // Predicated region
    $region38: #{tpu_custom_call.1} parent=1 // pred_check
      _
    $region39: #{tpu_custom_call.1} parent=1 // pred_check_branch
      %66 = sbr.rel (0) target = $region41
    $region40: #{tpu_custom_call.1} parent=1 // pred_region
      %67 = dma.done [#allocation6], 4096
    $region41: #{tpu_custom_call.1} parent=1 // pred_fallthru
      _
    // Predicated region
    $region42: #{tpu_custom_call.1} parent=1 // pred_check
      _
    $region43: #{tpu_custom_call.1} parent=1 // pred_check_branch
      %69 = sbr.rel (0) target = $region45
    $region44: #{tpu_custom_call.1} parent=1 // pred_region
      %70 = dma.done [#allocation6], 16384
    $region45: #{tpu_custom_call.1} parent=1 // pred_fallthru
      _
    %v72 = vlaneseq
    %v73 = vand.u32 %v72, 127
    %v74 = vld [vmem:[%s0] sm:$0xff]
    %75 = vset.pattern.permute.xlu0 0
    %76 = vperm.xlu0 %75, %v74
    %v77 = vpop.permute.xlu0 %76
    %vm78 = vcmp.eq.s32.totalorder %v73, %v77
    %v79 = vsel %vm78, 1, 0
    %v80 = vcvt.s32.f32 %v79
    %v81 = vld [vmem:[%s1] sm:$0xff]
    %82 = vset.pattern.permute.xlu0 0
    %83 = vperm.xlu0 %82, %v81
    %v84 = vpop.permute.xlu0 %83
    %vm85 = vcmp.eq.s32.totalorder %v73, %v84
    %v86 = vsel %vm85, 1, 0
    %v87 = vcvt.s32.f32 %v86
    %v88 = vld [vmem:[#allocation2] sm:$0xff]
    %v89 = vld [vmem:[#allocation2 + $0x8] sm:$0xff]
    %v90 = vld [vmem:[#allocation2 + $0x10] sm:$0xff]
    %v91 = vld [vmem:[#allocation2 + $0x18] sm:$0xff]
    %v92 = vld [vmem:[#allocation2 + $0x20] sm:$0xff]
    %v93 = vld [vmem:[#allocation2 + $0x28] sm:$0xff]
    %v94 = vld [vmem:[#allocation2 + $0x30] sm:$0xff]
    %vm95 = vcmask 457728
    %v97 = vsel %vm95, %v80, 0
    %99 = vmatprep.subr.mxu0 0.0
    %100 = vmatpush1.msra.mxu0 %v88
    %101 = vmatprep.subr.mxu0 0.0
    %102 = vmatpush1.msra.mxu0 %v89
    %103 = vmatprep.subr.mxu0 0.0
    %104 = vmatpush1.msra.mxu0 %v90
    %105 = vmatprep.subr.mxu0 0.0
    %106 = vmatpush1.msra.mxu0 %v91
    %107 = vmatprep.subr.mxu0 0.0
    %108 = vmatpush1.msra.mxu0 %v92
    %109 = vmatprep.subr.mxu0 0.0
    %110 = vmatpush1.msra.mxu0 %v93
    %111 = vmatprep.subr.mxu0 0.0
    %112 = vmatpush1.msra.mxu0 %v94
    %113 = vmatprep.subr.mxu0 0.0
    %114 = vmatpush1.msra.mxu0 0.0
    %115 = vmatprep.subr.mxu0 0.0
    %116 = vmatpush1.msra.mxu0 0.0
    %117 = vmatprep.subr.mxu0 0.0
    %118 = vmatpush1.msra.mxu0 0.0
    %119 = vmatprep.subr.mxu0 0.0
    %120 = vmatpush1.msra.mxu0 0.0
    %121 = vmatprep.subr.mxu0 0.0
    %122 = vmatpush1.msra.mxu0 0.0
    %123 = vmatprep.subr.mxu0 0.0
    %124 = vmatpush1.msra.mxu0 0.0
    %125 = vmatprep.subr.mxu0 0.0
    %126 = vmatpush1.msra.mxu0 0.0
    %127 = vmatprep.subr.mxu0 0.0
    %128 = vmatpush1.msra.mxu0 0.0
    %129 = vmatprep.subr.mxu0 0.0
    %130 = vmatpush1.msra.mxu0 0.0
    %131 = vmatprep.subr.mxu0 0.0
    %132 = vmatpush1.msra.mxu0 0.0
    %133 = vmatprep.subr.mxu0 0.0
    %134 = vmatpush1.msra.mxu0 0.0
    %135 = vmatprep.subr.mxu0 0.0
    %136 = vmatpush1.msra.mxu0 0.0
    %137 = vmatprep.subr.mxu0 0.0
    %138 = vmatpush1.msra.mxu0 0.0
    %139 = vmatprep.subr.mxu0 0.0
    %140 = vmatpush1.msra.mxu0 0.0
    %141 = vmatprep.subr.mxu0 0.0
    %142 = vmatpush1.msra.mxu0 0.0
    %143 = vmatprep.subr.mxu0 0.0
    %144 = vmatpush1.msra.mxu0 0.0
    %145 = vmatprep.subr.mxu0 0.0
    %146 = vmatpush1.msra.mxu0 0.0
    %147 = vmatprep.subr.mxu0 0.0
    %148 = vmatpush1.msra.mxu0 0.0
    %149 = vmatprep.subr.mxu0 0.0
    %150 = vmatpush1.msra.mxu0 0.0
    %151 = vmatprep.subr.mxu0 0.0
    %152 = vmatpush1.msra.mxu0 0.0
    %153 = vmatprep.subr.mxu0 0.0
    %154 = vmatpush1.msra.mxu0 0.0
    %155 = vmatprep.subr.mxu0 0.0
    %156 = vmatpush1.msra.mxu0 0.0
    %157 = vmatprep.subr.mxu0 0.0
    %158 = vmatpush1.msra.mxu0 0.0
    %159 = vmatprep.subr.mxu0 0.0
    %160 = vmatpush1.msra.mxu0 0.0
    %161 = vmatprep.subr.mxu0 0.0
    %162 = vmatpush1.msra.mxu0 0.0
    %163 = vmatprep.mubr.f32.mxu0 0.0
    %164 = vmatmul.mubr.f32.gmra.mrb[0].mxu0 %v97
    %v165 = vpop.f32.mrb[0].mxu0
    %v166 = vadd.f32 0.0, %v165
    %v167 = vpop.f32.mrb[0].mxu0
    %168 = vdwg.mxu0
    %v170 = vsel %vm95, %v87, 0
    %172 = vmatprep.subr.mxu0 0.0
    %173 = vmatpush1.msra.mxu0 %v88
    %174 = vmatprep.subr.mxu0 0.0
    %175 = vmatpush1.msra.mxu0 %v89
    %176 = vmatprep.subr.mxu0 0.0
    %177 = vmatpush1.msra.mxu0 %v90
    %178 = vmatprep.subr.mxu0 0.0
    %179 = vmatpush1.msra.mxu0 %v91
    %180 = vmatprep.subr.mxu0 0.0
    %181 = vmatpush1.msra.mxu0 %v92
    %182 = vmatprep.subr.mxu0 0.0
    %183 = vmatpush1.msra.mxu0 %v93
    %184 = vmatprep.subr.mxu0 0.0
    %185 = vmatpush1.msra.mxu0 %v94
    %186 = vmatprep.subr.mxu0 0.0
    %187 = vmatpush1.msra.mxu0 0.0
    %188 = vmatprep.subr.mxu0 0.0
    %189 = vmatpush1.msra.mxu0 0.0
    %190 = vmatprep.subr.mxu0 0.0
    %191 = vmatpush1.msra.mxu0 0.0
    %192 = vmatprep.subr.mxu0 0.0
    %193 = vmatpush1.msra.mxu0 0.0
    %194 = vmatprep.subr.mxu0 0.0
    %195 = vmatpush1.msra.mxu0 0.0
    %196 = vmatprep.subr.mxu0 0.0
    %197 = vmatpush1.msra.mxu0 0.0
    %198 = vmatprep.subr.mxu0 0.0
    %199 = vmatpush1.msra.mxu0 0.0
    %200 = vmatprep.subr.mxu0 0.0
    %201 = vmatpush1.msra.mxu0 0.0
    %202 = vmatprep.subr.mxu0 0.0
    %203 = vmatpush1.msra.mxu0 0.0
    %204 = vmatprep.subr.mxu0 0.0
    %205 = vmatpush1.msra.mxu0 0.0
    %206 = vmatprep.subr.mxu0 0.0
    %207 = vmatpush1.msra.mxu0 0.0
    %208 = vmatprep.subr.mxu0 0.0
    %209 = vmatpush1.msra.mxu0 0.0
    %210 = vmatprep.subr.mxu0 0.0
    %211 = vmatpush1.msra.mxu0 0.0
    %212 = vmatprep.subr.mxu0 0.0
    %213 = vmatpush1.msra.mxu0 0.0
    %214 = vmatprep.subr.mxu0 0.0
    %215 = vmatpush1.msra.mxu0 0.0
    %216 = vmatprep.subr.mxu0 0.0
    %217 = vmatpush1.msra.mxu0 0.0
    %218 = vmatprep.subr.mxu0 0.0
    %219 = vmatpush1.msra.mxu0 0.0
    %220 = vmatprep.subr.mxu0 0.0
    %221 = vmatpush1.msra.mxu0 0.0
    %222 = vmatprep.subr.mxu0 0.0
    %223 = vmatpush1.msra.mxu0 0.0
    %224 = vmatprep.subr.mxu0 0.0
    %225 = vmatpush1.msra.mxu0 0.0
    %226 = vmatprep.subr.mxu0 0.0
    %227 = vmatpush1.msra.mxu0 0.0
    %228 = vmatprep.subr.mxu0 0.0
    %229 = vmatpush1.msra.mxu0 0.0
    %230 = vmatprep.subr.mxu0 0.0
    %231 = vmatpush1.msra.mxu0 0.0
    %232 = vmatprep.subr.mxu0 0.0
    %233 = vmatpush1.msra.mxu0 0.0
    %234 = vmatprep.subr.mxu0 0.0
    %235 = vmatpush1.msra.mxu0 0.0
    %236 = vmatprep.mubr.f32.mxu0 0.0
    %237 = vmatmul.mubr.f32.gmra.mrb[0].mxu0 %v170
    %v238 = vpop.f32.mrb[0].mxu0
    %v239 = vadd.f32 0.0, %v238
    %v240 = vpop.f32.mrb[0].mxu0
    %241 = vdwg.mxu0
    %v242 = vsub.f32 %v239, %v166
    %v243 = vld [vmem:[%s2] sm:$0xff]
    %245 = vset.pattern.permute.xlu0 0
    %246 = vperm.xlu0 %245, %v243
    %v247 = vpop.permute.xlu0 %246
    %v249 = vmul.f32 %v242, %v247
    %v250 = vadd.f32 %v166, %v249
    %v251 = vpack.c.bf16 %v250, %v250
    %v252 = vld [vmem:[#allocation5] sm:$0xff]
    %v253 = vld [vmem:[#allocation5 + $0x8] sm:$0xff]
    %v254 = vld [vmem:[#allocation5 + $0x10] sm:$0xff]
    %v255 = vld [vmem:[#allocation5 + $0x18] sm:$0xff]
    %v256 = vld [vmem:[#allocation5 + $0x20] sm:$0xff]
    %v257 = vld [vmem:[#allocation5 + $0x28] sm:$0xff]
    %v258 = vld [vmem:[#allocation5 + $0x30] sm:$0xff]
    %v259 = vld [vmem:[#allocation5 + $0x38] sm:$0xff]
    %v260 = vld [vmem:[#allocation5 + $0x40] sm:$0xff]
    %v261 = vld [vmem:[#allocation5 + $0x48] sm:$0xff]
    %v262 = vld [vmem:[#allocation5 + $0x50] sm:$0xff]
    %v263 = vld [vmem:[#allocation5 + $0x58] sm:$0xff]
    %v264 = vld [vmem:[#allocation5 + $0x60] sm:$0xff]
    %v265 = vld [vmem:[#allocation5 + $0x68] sm:$0xff]
    %v266 = vld [vmem:[#allocation5 + $0x70] sm:$0xff]
    %v267 = vld [vmem:[#allocation5 + $0x78] sm:$0xff]
    %v268 = vld [vmem:[#allocation5 + $0x80] sm:$0xff]
    %v269 = vld [vmem:[#allocation5 + $0x88] sm:$0xff]
    %v270 = vld [vmem:[#allocation5 + $0x90] sm:$0xff]
    %v271 = vld [vmem:[#allocation5 + $0x98] sm:$0xff]
    %v272 = vld [vmem:[#allocation5 + $0xa0] sm:$0xff]
    %v273 = vld [vmem:[#allocation5 + $0xa8] sm:$0xff]
    %v274 = vld [vmem:[#allocation5 + $0xb0] sm:$0xff]
    %v275 = vld [vmem:[#allocation5 + $0xb8] sm:$0xff]
    %v276 = vld [vmem:[#allocation5 + $0xc0] sm:$0xff]
    %v277 = vld [vmem:[#allocation5 + $0xc8] sm:$0xff]
    %v278 = vld [vmem:[#allocation5 + $0xd0] sm:$0xff]
    %v279 = vld [vmem:[#allocation5 + $0xd8] sm:$0xff]
    %v280 = vld [vmem:[#allocation5 + $0xe0] sm:$0xff]
    %v281 = vld [vmem:[#allocation5 + $0xe8] sm:$0xff]
    %v282 = vld [vmem:[#allocation5 + $0xf0] sm:$0xff]
    %v283 = vld [vmem:[#allocation5 + $0xf8] sm:$0xff]
    %v284 = vld [vmem:[%s5] sm:$0xf]
    %v286 = vlaneseq
    %v287 = vshrl.u32 %v286, 7
    %v288 = vsub.s32 0, %v287
    %v289 = vrot.slane %v284, %v288
    %v290 = vlaneseq
    %v291 = vshrl.u32 %v290, 7
    %v292 = vsub.s32 1, %v291
    %v293 = vrot.slane %v284, %v292
    %v294 = vlaneseq
    %v295 = vshrl.u32 %v294, 7
    %v296 = vsub.s32 2, %v295
    %v297 = vrot.slane %v284, %v296
    %v298 = vlaneseq
    %v299 = vshrl.u32 %v298, 7
    %v300 = vsub.s32 3, %v299
    %v301 = vrot.slane %v284, %v300
    %v338 = vunpack.c.l.b16 %v252
    %v339 = vunpack.c.h.b16 %v252
    %v340 = vunpack.c.l.b16 %v253
    %v341 = vunpack.c.h.b16 %v253
    %v342 = vunpack.c.l.b16 %v254
    %v343 = vunpack.c.h.b16 %v254
    %v344 = vunpack.c.l.b16 %v255
    %v345 = vunpack.c.h.b16 %v255
    %v346 = vunpack.c.l.b16 %v256
    %v347 = vunpack.c.h.b16 %v256
    %v348 = vunpack.c.l.b16 %v257
    %v349 = vunpack.c.h.b16 %v257
    %v350 = vunpack.c.l.b16 %v258
    %v351 = vunpack.c.h.b16 %v258
    %v352 = vunpack.c.l.b16 %v259
    %v353 = vunpack.c.h.b16 %v259
    %v354 = vunpack.c.l.b16 %v260
    %v355 = vunpack.c.h.b16 %v260
    %v356 = vunpack.c.l.b16 %v261
    %v357 = vunpack.c.h.b16 %v261
    %v358 = vunpack.c.l.b16 %v262
    %v359 = vunpack.c.h.b16 %v262
    %v360 = vunpack.c.l.b16 %v263
    %v361 = vunpack.c.h.b16 %v263
    %v362 = vunpack.c.l.b16 %v264
    %v363 = vunpack.c.h.b16 %v264
    %v364 = vunpack.c.l.b16 %v265
    %v365 = vunpack.c.h.b16 %v265
    %v366 = vunpack.c.l.b16 %v266
    %v367 = vunpack.c.h.b16 %v266
    %v368 = vunpack.c.l.b16 %v267
    %v369 = vunpack.c.h.b16 %v267
    %v370 = vunpack.c.l.b16 %v268
    %v371 = vunpack.c.h.b16 %v268
    %v372 = vunpack.c.l.b16 %v269
    %v373 = vunpack.c.h.b16 %v269
    %v374 = vunpack.c.l.b16 %v270
    %v375 = vunpack.c.h.b16 %v270
    %v376 = vunpack.c.l.b16 %v271
    %v377 = vunpack.c.h.b16 %v271
    %v378 = vunpack.c.l.b16 %v272
    %v379 = vunpack.c.h.b16 %v272
    %v380 = vunpack.c.l.b16 %v273
    %v381 = vunpack.c.h.b16 %v273
    %v382 = vunpack.c.l.b16 %v274
    %v383 = vunpack.c.h.b16 %v274
    %v384 = vunpack.c.l.b16 %v275
    %v385 = vunpack.c.h.b16 %v275
    %v386 = vunpack.c.l.b16 %v276
    %v387 = vunpack.c.h.b16 %v276
    %v388 = vunpack.c.l.b16 %v277
    %v389 = vunpack.c.h.b16 %v277
    %v390 = vunpack.c.l.b16 %v278
    %v391 = vunpack.c.h.b16 %v278
    %v392 = vunpack.c.l.b16 %v279
    %v393 = vunpack.c.h.b16 %v279
    %v394 = vunpack.c.l.b16 %v280
    %v395 = vunpack.c.h.b16 %v280
    %v396 = vunpack.c.l.b16 %v281
    %v397 = vunpack.c.h.b16 %v281
    %v398 = vunpack.c.l.b16 %v282
    %v399 = vunpack.c.h.b16 %v282
    %v400 = vunpack.c.l.b16 %v283
    %v401 = vunpack.c.h.b16 %v283
    %v402 = vpack.c.b16 %v342, %v338
    %v403 = vpack.c.b16 %v343, %v339
    %v404 = vpack.c.b16 %v344, %v340
    %v405 = vpack.c.b16 %v345, %v341
    %v406 = vpack.c.b16 %v350, %v346
    %v407 = vpack.c.b16 %v351, %v347
    %v408 = vpack.c.b16 %v352, %v348
    %v409 = vpack.c.b16 %v353, %v349
    %v410 = vpack.c.b16 %v358, %v354
    %v411 = vpack.c.b16 %v359, %v355
    %v412 = vpack.c.b16 %v360, %v356
    %v413 = vpack.c.b16 %v361, %v357
    %v414 = vpack.c.b16 %v366, %v362
    %v415 = vpack.c.b16 %v367, %v363
    %v416 = vpack.c.b16 %v368, %v364
    %v417 = vpack.c.b16 %v369, %v365
    %v418 = vpack.c.b16 %v374, %v370
    %v419 = vpack.c.b16 %v375, %v371
    %v420 = vpack.c.b16 %v376, %v372
    %v421 = vpack.c.b16 %v377, %v373
    %v422 = vpack.c.b16 %v382, %v378
    %v423 = vpack.c.b16 %v383, %v379
    %v424 = vpack.c.b16 %v384, %v380
    %v425 = vpack.c.b16 %v385, %v381
    %v426 = vpack.c.b16 %v390, %v386
    %v427 = vpack.c.b16 %v391, %v387
    %v428 = vpack.c.b16 %v392, %v388
    %v429 = vpack.c.b16 %v393, %v389
    %v430 = vpack.c.b16 %v398, %v394
    %v431 = vpack.c.b16 %v399, %v395
    %v432 = vpack.c.b16 %v400, %v396
    %v433 = vpack.c.b16 %v401, %v397
    %466 = vmatprep.subr.bf16.mxu0 %v403
    %467 = vmatpush1.bf16.msra.mxu0 %v402
    %468 = vmatprep.subr.bf16.mxu0 %v407
    %469 = vmatpush1.bf16.msra.mxu0 %v406
    %470 = vmatprep.subr.bf16.mxu0 %v411
    %471 = vmatpush1.bf16.msra.mxu0 %v410
    %472 = vmatprep.subr.bf16.mxu0 %v415
    %473 = vmatpush1.bf16.msra.mxu0 %v414
    %474 = vmatprep.subr.bf16.mxu0 %v419
    %475 = vmatpush1.bf16.msra.mxu0 %v418
    %476 = vmatprep.subr.bf16.mxu0 %v423
    %477 = vmatpush1.bf16.msra.mxu0 %v422
    %478 = vmatprep.subr.bf16.mxu0 %v427
    %479 = vmatpush1.bf16.msra.mxu0 %v426
    %480 = vmatprep.subr.bf16.mxu0 %v431
    %481 = vmatpush1.bf16.msra.mxu0 %v430
    %482 = vmatprep.subr.bf16.mxu0 0
    %483 = vmatpush1.bf16.msra.mxu0 0
    %484 = vmatprep.subr.bf16.mxu0 0
    %485 = vmatpush1.bf16.msra.mxu0 0
    %486 = vmatprep.subr.bf16.mxu0 0
    %487 = vmatpush1.bf16.msra.mxu0 0
    %488 = vmatprep.subr.bf16.mxu0 0
    %489 = vmatpush1.bf16.msra.mxu0 0
    %490 = vmatprep.subr.bf16.mxu0 0
    %491 = vmatpush1.bf16.msra.mxu0 0
    %492 = vmatprep.subr.bf16.mxu0 0
    %493 = vmatpush1.bf16.msra.mxu0 0
    %494 = vmatprep.subr.bf16.mxu0 0
    %495 = vmatpush1.bf16.msra.mxu0 0
    %496 = vmatprep.subr.bf16.mxu0 0
    %497 = vmatpush1.bf16.msra.mxu0 0
    %498 = vmatprep.mubr.bf16.mxu0 0
    %499 = vmatmul.mubr.bf16.gmra.mrb[0].mxu0 %v251
    %v500 = vpop.f32.mrb[0].mxu0
    %v501 = vadd.f32 %v289, %v500
    %v502 = vpop.f32.mrb[0].mxu0
    %v503 = vadd.f32 %v293, %v502
    %v504 = vpop.f32.mrb[0].mxu0
    %v505 = vpop.f32.mrb[0].mxu0
    %506 = vdwg.mxu0
    %507 = vmatprep.subr.bf16.mxu0 %v405
    %508 = vmatpush1.bf16.msra.mxu0 %v404
    %509 = vmatprep.subr.bf16.mxu0 %v409
    %510 = vmatpush1.bf16.msra.mxu0 %v408
    %511 = vmatprep.subr.bf16.mxu0 %v413
    %512 = vmatpush1.bf16.msra.mxu0 %v412
    %513 = vmatprep.subr.bf16.mxu0 %v417
    %514 = vmatpush1.bf16.msra.mxu0 %v416
    %515 = vmatprep.subr.bf16.mxu0 %v421
    %516 = vmatpush1.bf16.msra.mxu0 %v420
    %517 = vmatprep.subr.bf16.mxu0 %v425
    %518 = vmatpush1.bf16.msra.mxu0 %v424
    %519 = vmatprep.subr.bf16.mxu0 %v429
    %520 = vmatpush1.bf16.msra.mxu0 %v428
    %521 = vmatprep.subr.bf16.mxu0 %v433
    %522 = vmatpush1.bf16.msra.mxu0 %v432
    %523 = vmatprep.subr.bf16.mxu0 0
    %524 = vmatpush1.bf16.msra.mxu0 0
    %525 = vmatprep.subr.bf16.mxu0 0
    %526 = vmatpush1.bf16.msra.mxu0 0
    %527 = vmatprep.subr.bf16.mxu0 0
    %528 = vmatpush1.bf16.msra.mxu0 0
    %529 = vmatprep.subr.bf16.mxu0 0
    %530 = vmatpush1.bf16.msra.mxu0 0
    %531 = vmatprep.subr.bf16.mxu0 0
    %532 = vmatpush1.bf16.msra.mxu0 0
    %533 = vmatprep.subr.bf16.mxu0 0
    %534 = vmatpush1.bf16.msra.mxu0 0
    %535 = vmatprep.subr.bf16.mxu0 0
    %536 = vmatpush1.bf16.msra.mxu0 0
    %537 = vmatprep.subr.bf16.mxu0 0
    %538 = vmatpush1.bf16.msra.mxu0 0
    %539 = vmatprep.mubr.bf16.mxu0 0
    %540 = vmatmul.mubr.bf16.gmra.mrb[0].mxu0 %v251
    %v541 = vpop.f32.mrb[0].mxu0
    %v542 = vadd.f32 %v297, %v541
    %v543 = vpop.f32.mrb[0].mxu0
    %v544 = vadd.f32 %v301, %v543
    %v545 = vpop.f32.mrb[0].mxu0
    %v546 = vpop.f32.mrb[0].mxu0
    %547 = vdwg.mxu0
    %v548 = vxor.u32 %v501, 2147483648
    %v549 = vxor.u32 %v503, 2147483648
    %v550 = vxor.u32 %v542, 2147483648
    %v551 = vxor.u32 %v544, 2147483648
    %v552 = vmul.f32 %v548, 1.442695
    %v553 = vpow.pop %v552
    %v554 = vmul.f32 %v549, 1.442695
    %v555 = vpow.pop %v554
    %v556 = vmul.f32 %v550, 1.442695
    %v557 = vpow.pop %v556
    %v558 = vmul.f32 %v551, 1.442695
    %v559 = vpow.pop %v558
    %v560 = vadd.f32 %v553, 1.0
    %v561 = vadd.f32 %v555, 1.0
    %v562 = vadd.f32 %v557, 1.0
    %v563 = vadd.f32 %v559, 1.0
    %v564 = vrcp.pop %v560
    %v565 = vmul.f32 1.0, %v564
    %v566 = vrcp.pop %v561
    %v567 = vmul.f32 1.0, %v566
    %v568 = vrcp.pop %v562
    %v569 = vmul.f32 1.0, %v568
    %v570 = vrcp.pop %v563
    %v571 = vmul.f32 1.0, %v570
    %v572 = vmul.f32 %v501, %v565
    %v573 = vmul.f32 %v503, %v567
    %v574 = vmul.f32 %v542, %v569
    %v575 = vmul.f32 %v544, %v571
    %v576 = vpack.c.bf16 %v572, %v572
    %v577 = vpack.c.bf16 %v573, %v573
    %v578 = vpack.c.bf16 %v574, %v574
    %v579 = vpack.c.bf16 %v575, %v575
    %v580 = vld [vmem:[#allocation7] sm:$0xff]
    %v581 = vld [vmem:[#allocation7 + $0x8] sm:$0xff]
    %v582 = vld [vmem:[#allocation7 + $0x10] sm:$0xff]
    %v583 = vld [vmem:[#allocation7 + $0x18] sm:$0xff]
    %v584 = vld [vmem:[#allocation7 + $0x20] sm:$0xff]
    %v585 = vld [vmem:[#allocation7 + $0x28] sm:$0xff]
    %v586 = vld [vmem:[#allocation7 + $0x30] sm:$0xff]
    %v587 = vld [vmem:[#allocation7 + $0x38] sm:$0xff]
    %v588 = vld [vmem:[#allocation7 + $0x40] sm:$0xff]
    %v589 = vld [vmem:[#allocation7 + $0x48] sm:$0xff]
    %v590 = vld [vmem:[#allocation7 + $0x50] sm:$0xff]
    %v591 = vld [vmem:[#allocation7 + $0x58] sm:$0xff]
    %v592 = vld [vmem:[#allocation7 + $0x60] sm:$0xff]
    %v593 = vld [vmem:[#allocation7 + $0x68] sm:$0xff]
    %v594 = vld [vmem:[#allocation7 + $0x70] sm:$0xff]
    %v595 = vld [vmem:[#allocation7 + $0x78] sm:$0xff]
    %v596 = vld [vmem:[#allocation7 + $0x80] sm:$0xff]
    %v597 = vld [vmem:[#allocation7 + $0x88] sm:$0xff]
    %v598 = vld [vmem:[#allocation7 + $0x90] sm:$0xff]
    %v599 = vld [vmem:[#allocation7 + $0x98] sm:$0xff]
    %v600 = vld [vmem:[#allocation7 + $0xa0] sm:$0xff]
    %v601 = vld [vmem:[#allocation7 + $0xa8] sm:$0xff]
    %v602 = vld [vmem:[#allocation7 + $0xb0] sm:$0xff]
    %v603 = vld [vmem:[#allocation7 + $0xb8] sm:$0xff]
    %v604 = vld [vmem:[#allocation7 + $0xc0] sm:$0xff]
    %v605 = vld [vmem:[#allocation7 + $0xc8] sm:$0xff]
    %v606 = vld [vmem:[#allocation7 + $0xd0] sm:$0xff]
    %v607 = vld [vmem:[#allocation7 + $0xd8] sm:$0xff]
    %v608 = vld [vmem:[#allocation7 + $0xe0] sm:$0xff]
    %v609 = vld [vmem:[#allocation7 + $0xe8] sm:$0xff]
    %v610 = vld [vmem:[#allocation7 + $0xf0] sm:$0xff]
    %v611 = vld [vmem:[#allocation7 + $0xf8] sm:$0xff]
    %v612 = vld [vmem:[#allocation7 + $0x100] sm:$0xff]
    %v613 = vld [vmem:[#allocation7 + $0x108] sm:$0xff]
    %v614 = vld [vmem:[#allocation7 + $0x110] sm:$0xff]
    %v615 = vld [vmem:[#allocation7 + $0x118] sm:$0xff]
    %v616 = vld [vmem:[#allocation7 + $0x120] sm:$0xff]
    %v617 = vld [vmem:[#allocation7 + $0x128] sm:$0xff]
    %v618 = vld [vmem:[#allocation7 + $0x130] sm:$0xff]
    %v619 = vld [vmem:[#allocation7 + $0x138] sm:$0xff]
    %v620 = vld [vmem:[#allocation7 + $0x140] sm:$0xff]
    %v621 = vld [vmem:[#allocation7 + $0x148] sm:$0xff]
    %v622 = vld [vmem:[#allocation7 + $0x150] sm:$0xff]
    %v623 = vld [vmem:[#allocation7 + $0x158] sm:$0xff]
    %v624 = vld [vmem:[#allocation7 + $0x160] sm:$0xff]
    %v625 = vld [vmem:[#allocation7 + $0x168] sm:$0xff]
    %v626 = vld [vmem:[#allocation7 + $0x170] sm:$0xff]
    %v627 = vld [vmem:[#allocation7 + $0x178] sm:$0xff]
    %v628 = vld [vmem:[#allocation7 + $0x180] sm:$0xff]
    %v629 = vld [vmem:[#allocation7 + $0x188] sm:$0xff]
    %v630 = vld [vmem:[#allocation7 + $0x190] sm:$0xff]
    %v631 = vld [vmem:[#allocation7 + $0x198] sm:$0xff]
    %v632 = vld [vmem:[#allocation7 + $0x1a0] sm:$0xff]
    %v633 = vld [vmem:[#allocation7 + $0x1a8] sm:$0xff]
    %v634 = vld [vmem:[#allocation7 + $0x1b0] sm:$0xff]
    %v635 = vld [vmem:[#allocation7 + $0x1b8] sm:$0xff]
    %v636 = vld [vmem:[#allocation7 + $0x1c0] sm:$0xff]
    %v637 = vld [vmem:[#allocation7 + $0x1c8] sm:$0xff]
    %v638 = vld [vmem:[#allocation7 + $0x1d0] sm:$0xff]
    %v639 = vld [vmem:[#allocation7 + $0x1d8] sm:$0xff]
    %v640 = vld [vmem:[#allocation7 + $0x1e0] sm:$0xff]
    %v641 = vld [vmem:[#allocation7 + $0x1e8] sm:$0xff]
    %v642 = vld [vmem:[#allocation7 + $0x1f0] sm:$0xff]
    %v643 = vld [vmem:[#allocation7 + $0x1f8] sm:$0xff]
    %v644 = vld [vmem:[#allocation7 + $0x200] sm:$0xff]
    %v645 = vld [vmem:[#allocation7 + $0x208] sm:$0xff]
    %v646 = vld [vmem:[#allocation7 + $0x210] sm:$0xff]
    %v647 = vld [vmem:[#allocation7 + $0x218] sm:$0xff]
    %v648 = vld [vmem:[#allocation7 + $0x220] sm:$0xff]
    %v649 = vld [vmem:[#allocation7 + $0x228] sm:$0xff]
    %v650 = vld [vmem:[#allocation7 + $0x230] sm:$0xff]
    %v651 = vld [vmem:[#allocation7 + $0x238] sm:$0xff]
    %v652 = vld [vmem:[#allocation7 + $0x240] sm:$0xff]
    %v653 = vld [vmem:[#allocation7 + $0x248] sm:$0xff]
    %v654 = vld [vmem:[#allocation7 + $0x250] sm:$0xff]
    %v655 = vld [vmem:[#allocation7 + $0x258] sm:$0xff]
    %v656 = vld [vmem:[#allocation7 + $0x260] sm:$0xff]
    %v657 = vld [vmem:[#allocation7 + $0x268] sm:$0xff]
    %v658 = vld [vmem:[#allocation7 + $0x270] sm:$0xff]
    %v659 = vld [vmem:[#allocation7 + $0x278] sm:$0xff]
    %v660 = vld [vmem:[#allocation7 + $0x280] sm:$0xff]
    %v661 = vld [vmem:[#allocation7 + $0x288] sm:$0xff]
    %v662 = vld [vmem:[#allocation7 + $0x290] sm:$0xff]
    %v663 = vld [vmem:[#allocation7 + $0x298] sm:$0xff]
    %v664 = vld [vmem:[#allocation7 + $0x2a0] sm:$0xff]
    %v665 = vld [vmem:[#allocation7 + $0x2a8] sm:$0xff]
    %v666 = vld [vmem:[#allocation7 + $0x2b0] sm:$0xff]
    %v667 = vld [vmem:[#allocation7 + $0x2b8] sm:$0xff]
    %v668 = vld [vmem:[#allocation7 + $0x2c0] sm:$0xff]
    %v669 = vld [vmem:[#allocation7 + $0x2c8] sm:$0xff]
    %v670 = vld [vmem:[#allocation7 + $0x2d0] sm:$0xff]
    %v671 = vld [vmem:[#allocation7 + $0x2d8] sm:$0xff]
    %v672 = vld [vmem:[#allocation7 + $0x2e0] sm:$0xff]
    %v673 = vld [vmem:[#allocation7 + $0x2e8] sm:$0xff]
    %v674 = vld [vmem:[#allocation7 + $0x2f0] sm:$0xff]
    %v675 = vld [vmem:[#allocation7 + $0x2f8] sm:$0xff]
    %v676 = vld [vmem:[#allocation7 + $0x300] sm:$0xff]
    %v677 = vld [vmem:[#allocation7 + $0x308] sm:$0xff]
    %v678 = vld [vmem:[#allocation7 + $0x310] sm:$0xff]
    %v679 = vld [vmem:[#allocation7 + $0x318] sm:$0xff]
    %v680 = vld [vmem:[#allocation7 + $0x320] sm:$0xff]
    %v681 = vld [vmem:[#allocation7 + $0x328] sm:$0xff]
    %v682 = vld [vmem:[#allocation7 + $0x330] sm:$0xff]
    %v683 = vld [vmem:[#allocation7 + $0x338] sm:$0xff]
    %v684 = vld [vmem:[#allocation7 + $0x340] sm:$0xff]
    %v685 = vld [vmem:[#allocation7 + $0x348] sm:$0xff]
    %v686 = vld [vmem:[#allocation7 + $0x350] sm:$0xff]
    %v687 = vld [vmem:[#allocation7 + $0x358] sm:$0xff]
    %v688 = vld [vmem:[#allocation7 + $0x360] sm:$0xff]
    %v689 = vld [vmem:[#allocation7 + $0x368] sm:$0xff]
    %v690 = vld [vmem:[#allocation7 + $0x370] sm:$0xff]
    %v691 = vld [vmem:[#allocation7 + $0x378] sm:$0xff]
    %v692 = vld [vmem:[#allocation7 + $0x380] sm:$0xff]
    %v693 = vld [vmem:[#allocation7 + $0x388] sm:$0xff]
    %v694 = vld [vmem:[#allocation7 + $0x390] sm:$0xff]
    %v695 = vld [vmem:[#allocation7 + $0x398] sm:$0xff]
    %v696 = vld [vmem:[#allocation7 + $0x3a0] sm:$0xff]
    %v697 = vld [vmem:[#allocation7 + $0x3a8] sm:$0xff]
    %v698 = vld [vmem:[#allocation7 + $0x3b0] sm:$0xff]
    %v699 = vld [vmem:[#allocation7 + $0x3b8] sm:$0xff]
    %v700 = vld [vmem:[#allocation7 + $0x3c0] sm:$0xff]
    %v701 = vld [vmem:[#allocation7 + $0x3c8] sm:$0xff]
    %v702 = vld [vmem:[#allocation7 + $0x3d0] sm:$0xff]
    %v703 = vld [vmem:[#allocation7 + $0x3d8] sm:$0xff]
    %v704 = vld [vmem:[#allocation7 + $0x3e0] sm:$0xff]
    %v705 = vld [vmem:[#allocation7 + $0x3e8] sm:$0xff]
    %v706 = vld [vmem:[#allocation7 + $0x3f0] sm:$0xff]
    %v707 = vld [vmem:[#allocation7 + $0x3f8] sm:$0xff]
    %v708 = vld [vmem:[%s7] sm:$0xf]
    %v710 = vlaneseq
    %v711 = vshrl.u32 %v710, 7
    %v712 = vsub.s32 0, %v711
    %v713 = vrot.slane %v708, %v712
    %v714 = vlaneseq
    %v715 = vshrl.u32 %v714, 7
    %v716 = vsub.s32 1, %v715
    %v717 = vrot.slane %v708, %v716
    %v718 = vlaneseq
    %v719 = vshrl.u32 %v718, 7
    %v720 = vsub.s32 2, %v719
    %v721 = vrot.slane %v708, %v720
    %v722 = vlaneseq
    %v723 = vshrl.u32 %v722, 7
    %v724 = vsub.s32 3, %v723
    %v725 = vrot.slane %v708, %v724
    %v858 = vunpack.c.l.b16 %v580
    %v859 = vunpack.c.h.b16 %v580
    %v860 = vunpack.c.l.b16 %v581
    %v861 = vunpack.c.h.b16 %v581
    %v862 = vunpack.c.l.b16 %v582
    %v863 = vunpack.c.h.b16 %v582
    %v864 = vunpack.c.l.b16 %v583
    %v865 = vunpack.c.h.b16 %v583
    %v866 = vunpack.c.l.b16 %v584
    %v867 = vunpack.c.h.b16 %v584
    %v868 = vunpack.c.l.b16 %v585
    %v869 = vunpack.c.h.b16 %v585
    %v870 = vunpack.c.l.b16 %v586
    %v871 = vunpack.c.h.b16 %v586
    %v872 = vunpack.c.l.b16 %v587
    %v873 = vunpack.c.h.b16 %v587
    %v874 = vunpack.c.l.b16 %v588
    %v875 = vunpack.c.h.b16 %v588
    %v876 = vunpack.c.l.b16 %v589
    %v877 = vunpack.c.h.b16 %v589
    %v878 = vunpack.c.l.b16 %v590
    %v879 = vunpack.c.h.b16 %v590
    %v880 = vunpack.c.l.b16 %v591
    %v881 = vunpack.c.h.b16 %v591
    %v882 = vunpack.c.l.b16 %v592
    %v883 = vunpack.c.h.b16 %v592
    %v884 = vunpack.c.l.b16 %v593
    %v885 = vunpack.c.h.b16 %v593
    %v886 = vunpack.c.l.b16 %v594
    %v887 = vunpack.c.h.b16 %v594
    %v888 = vunpack.c.l.b16 %v595
    %v889 = vunpack.c.h.b16 %v595
    %v890 = vunpack.c.l.b16 %v596
    %v891 = vunpack.c.h.b16 %v596
    %v892 = vunpack.c.l.b16 %v597
    %v893 = vunpack.c.h.b16 %v597
    %v894 = vunpack.c.l.b16 %v598
    %v895 = vunpack.c.h.b16 %v598
    %v896 = vunpack.c.l.b16 %v599
    %v897 = vunpack.c.h.b16 %v599
    %v898 = vunpack.c.l.b16 %v600
    %v899 = vunpack.c.h.b16 %v600
    %v900 = vunpack.c.l.b16 %v601
    %v901 = vunpack.c.h.b16 %v601
    %v902 = vunpack.c.l.b16 %v602
    %v903 = vunpack.c.h.b16 %v602
    %v904 = vunpack.c.l.b16 %v603
    %v905 = vunpack.c.h.b16 %v603
    %v906 = vunpack.c.l.b16 %v604
    %v907 = vunpack.c.h.b16 %v604
    %v908 = vunpack.c.l.b16 %v605
    %v909 = vunpack.c.h.b16 %v605
    %v910 = vunpack.c.l.b16 %v606
    %v911 = vunpack.c.h.b16 %v606
    %v912 = vunpack.c.l.b16 %v607
    %v913 = vunpack.c.h.b16 %v607
    %v914 = vunpack.c.l.b16 %v608
    %v915 = vunpack.c.h.b16 %v608
    %v916 = vunpack.c.l.b16 %v609
    %v917 = vunpack.c.h.b16 %v609
    %v918 = vunpack.c.l.b16 %v610
    %v919 = vunpack.c.h.b16 %v610
    %v920 = vunpack.c.l.b16 %v611
    %v921 = vunpack.c.h.b16 %v611
    %v922 = vunpack.c.l.b16 %v612
    %v923 = vunpack.c.h.b16 %v612
    %v924 = vunpack.c.l.b16 %v613
    %v925 = vunpack.c.h.b16 %v613
    %v926 = vunpack.c.l.b16 %v614
    %v927 = vunpack.c.h.b16 %v614
    %v928 = vunpack.c.l.b16 %v615
    %v929 = vunpack.c.h.b16 %v615
    %v930 = vunpack.c.l.b16 %v616
    %v931 = vunpack.c.h.b16 %v616
    %v932 = vunpack.c.l.b16 %v617
    %v933 = vunpack.c.h.b16 %v617
    %v934 = vunpack.c.l.b16 %v618
    %v935 = vunpack.c.h.b16 %v618
    %v936 = vunpack.c.l.b16 %v619
    %v937 = vunpack.c.h.b16 %v619
    %v938 = vunpack.c.l.b16 %v620
    %v939 = vunpack.c.h.b16 %v620
    %v940 = vunpack.c.l.b16 %v621
    %v941 = vunpack.c.h.b16 %v621
    %v942 = vunpack.c.l.b16 %v622
    %v943 = vunpack.c.h.b16 %v622
    %v944 = vunpack.c.l.b16 %v623
    %v945 = vunpack.c.h.b16 %v623
    %v946 = vunpack.c.l.b16 %v624
    %v947 = vunpack.c.h.b16 %v624
    %v948 = vunpack.c.l.b16 %v625
    %v949 = vunpack.c.h.b16 %v625
    %v950 = vunpack.c.l.b16 %v626
    %v951 = vunpack.c.h.b16 %v626
    %v952 = vunpack.c.l.b16 %v627
    %v953 = vunpack.c.h.b16 %v627
    %v954 = vunpack.c.l.b16 %v628
    %v955 = vunpack.c.h.b16 %v628
    %v956 = vunpack.c.l.b16 %v629
    %v957 = vunpack.c.h.b16 %v629
    %v958 = vunpack.c.l.b16 %v630
    %v959 = vunpack.c.h.b16 %v630
    %v960 = vunpack.c.l.b16 %v631
    %v961 = vunpack.c.h.b16 %v631
    %v962 = vunpack.c.l.b16 %v632
    %v963 = vunpack.c.h.b16 %v632
    %v964 = vunpack.c.l.b16 %v633
    %v965 = vunpack.c.h.b16 %v633
    %v966 = vunpack.c.l.b16 %v634
    %v967 = vunpack.c.h.b16 %v634
    %v968 = vunpack.c.l.b16 %v635
    %v969 = vunpack.c.h.b16 %v635
    %v970 = vunpack.c.l.b16 %v636
    %v971 = vunpack.c.h.b16 %v636
    %v972 = vunpack.c.l.b16 %v637
    %v973 = vunpack.c.h.b16 %v637
    %v974 = vunpack.c.l.b16 %v638
    %v975 = vunpack.c.h.b16 %v638
    %v976 = vunpack.c.l.b16 %v639
    %v977 = vunpack.c.h.b16 %v639
    %v978 = vunpack.c.l.b16 %v640
    %v979 = vunpack.c.h.b16 %v640
    %v980 = vunpack.c.l.b16 %v641
    %v981 = vunpack.c.h.b16 %v641
    %v982 = vunpack.c.l.b16 %v642
    %v983 = vunpack.c.h.b16 %v642
    %v984 = vunpack.c.l.b16 %v643
    %v985 = vunpack.c.h.b16 %v643
    %v986 = vunpack.c.l.b16 %v644
    %v987 = vunpack.c.h.b16 %v644
    %v988 = vunpack.c.l.b16 %v645
    %v989 = vunpack.c.h.b16 %v645
    %v990 = vunpack.c.l.b16 %v646
    %v991 = vunpack.c.h.b16 %v646
    %v992 = vunpack.c.l.b16 %v647
    %v993 = vunpack.c.h.b16 %v647
    %v994 = vunpack.c.l.b16 %v648
    %v995 = vunpack.c.h.b16 %v648
    %v996 = vunpack.c.l.b16 %v649
    %v997 = vunpack.c.h.b16 %v649
    %v998 = vunpack.c.l.b16 %v650
    %v999 = vunpack.c.h.b16 %v650
    %v1000 = vunpack.c.l.b16 %v651
    %v1001 = vunpack.c.h.b16 %v651
    %v1002 = vunpack.c.l.b16 %v652
    %v1003 = vunpack.c.h.b16 %v652
    %v1004 = vunpack.c.l.b16 %v653
    %v1005 = vunpack.c.h.b16 %v653
    %v1006 = vunpack.c.l.b16 %v654
    %v1007 = vunpack.c.h.b16 %v654
    %v1008 = vunpack.c.l.b16 %v655
    %v1009 = vunpack.c.h.b16 %v655
    %v1010 = vunpack.c.l.b16 %v656
    %v1011 = vunpack.c.h.b16 %v656
    %v1012 = vunpack.c.l.b16 %v657
    %v1013 = vunpack.c.h.b16 %v657
    %v1014 = vunpack.c.l.b16 %v658
    %v1015 = vunpack.c.h.b16 %v658
    %v1016 = vunpack.c.l.b16 %v659
    %v1017 = vunpack.c.h.b16 %v659
    %v1018 = vunpack.c.l.b16 %v660
    %v1019 = vunpack.c.h.b16 %v660
    %v1020 = vunpack.c.l.b16 %v661
    %v1021 = vunpack.c.h.b16 %v661
    %v1022 = vunpack.c.l.b16 %v662
    %v1023 = vunpack.c.h.b16 %v662
    %v1024 = vunpack.c.l.b16 %v663
    %v1025 = vunpack.c.h.b16 %v663
    %v1026 = vunpack.c.l.b16 %v664
    %v1027 = vunpack.c.h.b16 %v664
    %v1028 = vunpack.c.l.b16 %v665
    %v1029 = vunpack.c.h.b16 %v665
    %v1030 = vunpack.c.l.b16 %v666
    %v1031 = vunpack.c.h.b16 %v666
    %v1032 = vunpack.c.l.b16 %v667
    %v1033 = vunpack.c.h.b16 %v667
    %v1034 = vunpack.c.l.b16 %v668
    %v1035 = vunpack.c.h.b16 %v668
    %v1036 = vunpack.c.l.b16 %v669
    %v1037 = vunpack.c.h.b16 %v669
    %v1038 = vunpack.c.l.b16 %v670
    %v1039 = vunpack.c.h.b16 %v670
    %v1040 = vunpack.c.l.b16 %v671
    %v1041 = vunpack.c.h.b16 %v671
    %v1042 = vunpack.c.l.b16 %v672
    %v1043 = vunpack.c.h.b16 %v672
    %v1044 = vunpack.c.l.b16 %v673
    %v1045 = vunpack.c.h.b16 %v673
    %v1046 = vunpack.c.l.b16 %v674
    %v1047 = vunpack.c.h.b16 %v674
    %v1048 = vunpack.c.l.b16 %v675
    %v1049 = vunpack.c.h.b16 %v675
    %v1050 = vunpack.c.l.b16 %v676
    %v1051 = vunpack.c.h.b16 %v676
    %v1052 = vunpack.c.l.b16 %v677
    %v1053 = vunpack.c.h.b16 %v677
    %v1054 = vunpack.c.l.b16 %v678
    %v1055 = vunpack.c.h.b16 %v678
    %v1056 = vunpack.c.l.b16 %v679
    %v1057 = vunpack.c.h.b16 %v679
    %v1058 = vunpack.c.l.b16 %v680
    %v1059 = vunpack.c.h.b16 %v680
    %v1060 = vunpack.c.l.b16 %v681
    %v1061 = vunpack.c.h.b16 %v681
    %v1062 = vunpack.c.l.b16 %v682
    %v1063 = vunpack.c.h.b16 %v682
    %v1064 = vunpack.c.l.b16 %v683
    %v1065 = vunpack.c.h.b16 %v683
    %v1066 = vunpack.c.l.b16 %v684
    %v1067 = vunpack.c.h.b16 %v684
    %v1068 = vunpack.c.l.b16 %v685
    %v1069 = vunpack.c.h.b16 %v685
    %v1070 = vunpack.c.l.b16 %v686
    %v1071 = vunpack.c.h.b16 %v686
    %v1072 = vunpack.c.l.b16 %v687
    %v1073 = vunpack.c.h.b16 %v687
    %v1074 = vunpack.c.l.b16 %v688
    %v1075 = vunpack.c.h.b16 %v688
    %v1076 = vunpack.c.l.b16 %v689
    %v1077 = vunpack.c.h.b16 %v689
    %v1078 = vunpack.c.l.b16 %v690
    %v1079 = vunpack.c.h.b16 %v690
    %v1080 = vunpack.c.l.b16 %v691
    %v1081 = vunpack.c.h.b16 %v691
    %v1082 = vunpack.c.l.b16 %v692
    %v1083 = vunpack.c.h.b16 %v692
    %v1084 = vunpack.c.l.b16 %v693
    %v1085 = vunpack.c.h.b16 %v693
    %v1086 = vunpack.c.l.b16 %v694
    %v1087 = vunpack.c.h.b16 %v694
    %v1088 = vunpack.c.l.b16 %v695
    %v1089 = vunpack.c.h.b16 %v695
    %v1090 = vunpack.c.l.b16 %v696
    %v1091 = vunpack.c.h.b16 %v696
    %v1092 = vunpack.c.l.b16 %v697
    %v1093 = vunpack.c.h.b16 %v697
    %v1094 = vunpack.c.l.b16 %v698
    %v1095 = vunpack.c.h.b16 %v698
    %v1096 = vunpack.c.l.b16 %v699
    %v1097 = vunpack.c.h.b16 %v699
    %v1098 = vunpack.c.l.b16 %v700
    %v1099 = vunpack.c.h.b16 %v700
    %v1100 = vunpack.c.l.b16 %v701
    %v1101 = vunpack.c.h.b16 %v701
    %v1102 = vunpack.c.l.b16 %v702
    %v1103 = vunpack.c.h.b16 %v702
    %v1104 = vunpack.c.l.b16 %v703
    %v1105 = vunpack.c.h.b16 %v703
    %v1106 = vunpack.c.l.b16 %v704
    %v1107 = vunpack.c.h.b16 %v704
    %v1108 = vunpack.c.l.b16 %v705
    %v1109 = vunpack.c.h.b16 %v705
    %v1110 = vunpack.c.l.b16 %v706
    %v1111 = vunpack.c.h.b16 %v706
    %v1112 = vunpack.c.l.b16 %v707
    %v1113 = vunpack.c.h.b16 %v707
    %v1114 = vpack.c.b16 %v862, %v858
    %v1115 = vpack.c.b16 %v863, %v859
    %v1116 = vpack.c.b16 %v864, %v860
    %v1117 = vpack.c.b16 %v865, %v861
    %v1118 = vpack.c.b16 %v870, %v866
    %v1119 = vpack.c.b16 %v871, %v867
    %v1120 = vpack.c.b16 %v872, %v868
    %v1121 = vpack.c.b16 %v873, %v869
    %v1122 = vpack.c.b16 %v878, %v874
    %v1123 = vpack.c.b16 %v879, %v875
    %v1124 = vpack.c.b16 %v880, %v876
    %v1125 = vpack.c.b16 %v881, %v877
    %v1126 = vpack.c.b16 %v886, %v882
    %v1127 = vpack.c.b16 %v887, %v883
    %v1128 = vpack.c.b16 %v888, %v884
    %v1129 = vpack.c.b16 %v889, %v885
    %v1130 = vpack.c.b16 %v894, %v890
    %v1131 = vpack.c.b16 %v895, %v891
    %v1132 = vpack.c.b16 %v896, %v892
    %v1133 = vpack.c.b16 %v897, %v893
    %v1134 = vpack.c.b16 %v902, %v898
    %v1135 = vpack.c.b16 %v903, %v899
    %v1136 = vpack.c.b16 %v904, %v900
    %v1137 = vpack.c.b16 %v905, %v901
    %v1138 = vpack.c.b16 %v910, %v906
    %v1139 = vpack.c.b16 %v911, %v907
    %v1140 = vpack.c.b16 %v912, %v908
    %v1141 = vpack.c.b16 %v913, %v909
    %v1142 = vpack.c.b16 %v918, %v914
    %v1143 = vpack.c.b16 %v919, %v915
    %v1144 = vpack.c.b16 %v920, %v916
    %v1145 = vpack.c.b16 %v921, %v917
    %v1146 = vpack.c.b16 %v926, %v922
    %v1147 = vpack.c.b16 %v927, %v923
    %v1148 = vpack.c.b16 %v928, %v924
    %v1149 = vpack.c.b16 %v929, %v925
    %v1150 = vpack.c.b16 %v934, %v930
    %v1151 = vpack.c.b16 %v935, %v931
    %v1152 = vpack.c.b16 %v936, %v932
    %v1153 = vpack.c.b16 %v937, %v933
    %v1154 = vpack.c.b16 %v942, %v938
    %v1155 = vpack.c.b16 %v943, %v939
    %v1156 = vpack.c.b16 %v944, %v940
    %v1157 = vpack.c.b16 %v945, %v941
    %v1158 = vpack.c.b16 %v950, %v946
    %v1159 = vpack.c.b16 %v951, %v947
    %v1160 = vpack.c.b16 %v952, %v948
    %v1161 = vpack.c.b16 %v953, %v949
    %v1162 = vpack.c.b16 %v958, %v954
    %v1163 = vpack.c.b16 %v959, %v955
    %v1164 = vpack.c.b16 %v960, %v956
    %v1165 = vpack.c.b16 %v961, %v957
    %v1166 = vpack.c.b16 %v966, %v962
    %v1167 = vpack.c.b16 %v967, %v963
    %v1168 = vpack.c.b16 %v968, %v964
    %v1169 = vpack.c.b16 %v969, %v965
    %v1170 = vpack.c.b16 %v974, %v970
    %v1171 = vpack.c.b16 %v975, %v971
    %v1172 = vpack.c.b16 %v976, %v972
    %v1173 = vpack.c.b16 %v977, %v973
    %v1174 = vpack.c.b16 %v982, %v978
    %v1175 = vpack.c.b16 %v983, %v979
    %v1176 = vpack.c.b16 %v984, %v980
    %v1177 = vpack.c.b16 %v985, %v981
    %v1178 = vpack.c.b16 %v990, %v986
    %v1179 = vpack.c.b16 %v991, %v987
    %v1180 = vpack.c.b16 %v992, %v988
    %v1181 = vpack.c.b16 %v993, %v989
    %v1182 = vpack.c.b16 %v998, %v994
    %v1183 = vpack.c.b16 %v999, %v995
    %v1184 = vpack.c.b16 %v1000, %v996
    %v1185 = vpack.c.b16 %v1001, %v997
    %v1186 = vpack.c.b16 %v1006, %v1002
    %v1187 = vpack.c.b16 %v1007, %v1003
    %v1188 = vpack.c.b16 %v1008, %v1004
    %v1189 = vpack.c.b16 %v1009, %v1005
    %v1190 = vpack.c.b16 %v1014, %v1010
    %v1191 = vpack.c.b16 %v1015, %v1011
    %v1192 = vpack.c.b16 %v1016, %v1012
    %v1193 = vpack.c.b16 %v1017, %v1013
    %v1194 = vpack.c.b16 %v1022, %v1018
    %v1195 = vpack.c.b16 %v1023, %v1019
    %v1196 = vpack.c.b16 %v1024, %v1020
    %v1197 = vpack.c.b16 %v1025, %v1021
    %v1198 = vpack.c.b16 %v1030, %v1026
    %v1199 = vpack.c.b16 %v1031, %v1027
    %v1200 = vpack.c.b16 %v1032, %v1028
    %v1201 = vpack.c.b16 %v1033, %v1029
    %v1202 = vpack.c.b16 %v1038, %v1034
    %v1203 = vpack.c.b16 %v1039, %v1035
    %v1204 = vpack.c.b16 %v1040, %v1036
    %v1205 = vpack.c.b16 %v1041, %v1037
    %v1206 = vpack.c.b16 %v1046, %v1042
    %v1207 = vpack.c.b16 %v1047, %v1043
    %v1208 = vpack.c.b16 %v1048, %v1044
    %v1209 = vpack.c.b16 %v1049, %v1045
    %v1210 = vpack.c.b16 %v1054, %v1050
    %v1211 = vpack.c.b16 %v1055, %v1051
    %v1212 = vpack.c.b16 %v1056, %v1052
    %v1213 = vpack.c.b16 %v1057, %v1053
    %v1214 = vpack.c.b16 %v1062, %v1058
    %v1215 = vpack.c.b16 %v1063, %v1059
    %v1216 = vpack.c.b16 %v1064, %v1060
    %v1217 = vpack.c.b16 %v1065, %v1061
    %v1218 = vpack.c.b16 %v1070, %v1066
    %v1219 = vpack.c.b16 %v1071, %v1067
    %v1220 = vpack.c.b16 %v1072, %v1068
    %v1221 = vpack.c.b16 %v1073, %v1069
    %v1222 = vpack.c.b16 %v1078, %v1074
    %v1223 = vpack.c.b16 %v1079, %v1075
    %v1224 = vpack.c.b16 %v1080, %v1076
    %v1225 = vpack.c.b16 %v1081, %v1077
    %v1226 = vpack.c.b16 %v1086, %v1082
    %v1227 = vpack.c.b16 %v1087, %v1083
    %v1228 = vpack.c.b16 %v1088, %v1084
    %v1229 = vpack.c.b16 %v1089, %v1085
    %v1230 = vpack.c.b16 %v1094, %v1090
    %v1231 = vpack.c.b16 %v1095, %v1091
    %v1232 = vpack.c.b16 %v1096, %v1092
    %v1233 = vpack.c.b16 %v1097, %v1093
    %v1234 = vpack.c.b16 %v1102, %v1098
    %v1235 = vpack.c.b16 %v1103, %v1099
    %v1236 = vpack.c.b16 %v1104, %v1100
    %v1237 = vpack.c.b16 %v1105, %v1101
    %v1238 = vpack.c.b16 %v1110, %v1106
    %v1239 = vpack.c.b16 %v1111, %v1107
    %v1240 = vpack.c.b16 %v1112, %v1108
    %v1241 = vpack.c.b16 %v1113, %v1109
    %1370 = vmatprep.subr.bf16.mxu0 %v1115
    %1371 = vmatpush1.bf16.msra.mxu0 %v1114
    %1372 = vmatprep.subr.bf16.mxu0 %v1119
    %1373 = vmatpush1.bf16.msra.mxu0 %v1118
    %1374 = vmatprep.subr.bf16.mxu0 %v1123
    %1375 = vmatpush1.bf16.msra.mxu0 %v1122
    %1376 = vmatprep.subr.bf16.mxu0 %v1127
    %1377 = vmatpush1.bf16.msra.mxu0 %v1126
    %1378 = vmatprep.subr.bf16.mxu0 %v1131
    %1379 = vmatpush1.bf16.msra.mxu0 %v1130
    %1380 = vmatprep.subr.bf16.mxu0 %v1135
    %1381 = vmatpush1.bf16.msra.mxu0 %v1134
    %1382 = vmatprep.subr.bf16.mxu0 %v1139
    %1383 = vmatpush1.bf16.msra.mxu0 %v1138
    %1384 = vmatprep.subr.bf16.mxu0 %v1143
    %1385 = vmatpush1.bf16.msra.mxu0 %v1142
    %1386 = vmatprep.subr.bf16.mxu0 %v1147
    %1387 = vmatpush1.bf16.msra.mxu0 %v1146
    %1388 = vmatprep.subr.bf16.mxu0 %v1151
    %1389 = vmatpush1.bf16.msra.mxu0 %v1150
    %1390 = vmatprep.subr.bf16.mxu0 %v1155
    %1391 = vmatpush1.bf16.msra.mxu0 %v1154
    %1392 = vmatprep.subr.bf16.mxu0 %v1159
    %1393 = vmatpush1.bf16.msra.mxu0 %v1158
    %1394 = vmatprep.subr.bf16.mxu0 %v1163
    %1395 = vmatpush1.bf16.msra.mxu0 %v1162
    %1396 = vmatprep.subr.bf16.mxu0 %v1167
    %1397 = vmatpush1.bf16.msra.mxu0 %v1166
    %1398 = vmatprep.subr.bf16.mxu0 %v1171
    %1399 = vmatpush1.bf16.msra.mxu0 %v1170
    %1400 = vmatprep.subr.bf16.mxu0 %v1175
    %1401 = vmatpush1.bf16.msra.mxu0 %v1174
    %1402 = vmatprep.mubr.bf16.mxu0 %v577
    %1403 = vmatmul.mubr.bf16.gmra.mrb[0].mxu0 %v576
    %v1404 = vpop.f32.mrb[0].mxu0
    %v1405 = vadd.f32 %v713, %v1404
    %v1406 = vpop.f32.mrb[0].mxu0
    %v1407 = vadd.f32 %v717, %v1406
    %v1408 = vpop.f32.mrb[0].mxu0
    %v1409 = vpop.f32.mrb[0].mxu0
    %1410 = vdwg.mxu0
    %1411 = vmatprep.subr.bf16.mxu0 %v1179
    %1412 = vmatpush1.bf16.msra.mxu0 %v1178
    %1413 = vmatprep.subr.bf16.mxu0 %v1183
    %1414 = vmatpush1.bf16.msra.mxu0 %v1182
    %1415 = vmatprep.subr.bf16.mxu0 %v1187
    %1416 = vmatpush1.bf16.msra.mxu0 %v1186
    %1417 = vmatprep.subr.bf16.mxu0 %v1191
    %1418 = vmatpush1.bf16.msra.mxu0 %v1190
    %1419 = vmatprep.subr.bf16.mxu0 %v1195
    %1420 = vmatpush1.bf16.msra.mxu0 %v1194
    %1421 = vmatprep.subr.bf16.mxu0 %v1199
    %1422 = vmatpush1.bf16.msra.mxu0 %v1198
    %1423 = vmatprep.subr.bf16.mxu0 %v1203
    %1424 = vmatpush1.bf16.msra.mxu0 %v1202
    %1425 = vmatprep.subr.bf16.mxu0 %v1207
    %1426 = vmatpush1.bf16.msra.mxu0 %v1206
    %1427 = vmatprep.subr.bf16.mxu0 %v1211
    %1428 = vmatpush1.bf16.msra.mxu0 %v1210
    %1429 = vmatprep.subr.bf16.mxu0 %v1215
    %1430 = vmatpush1.bf16.msra.mxu0 %v1214
    %1431 = vmatprep.subr.bf16.mxu0 %v1219
    %1432 = vmatpush1.bf16.msra.mxu0 %v1218
    %1433 = vmatprep.subr.bf16.mxu0 %v1223
    %1434 = vmatpush1.bf16.msra.mxu0 %v1222
    %1435 = vmatprep.subr.bf16.mxu0 %v1227
    %1436 = vmatpush1.bf16.msra.mxu0 %v1226
    %1437 = vmatprep.subr.bf16.mxu0 %v1231
    %1438 = vmatpush1.bf16.msra.mxu0 %v1230
    %1439 = vmatprep.subr.bf16.mxu0 %v1235
    %1440 = vmatpush1.bf16.msra.mxu0 %v1234
    %1441 = vmatprep.subr.bf16.mxu0 %v1239
    %1442 = vmatpush1.bf16.msra.mxu0 %v1238
    %1443 = vmatprep.mubr.bf16.mxu0 %v579
    %1444 = vmatmul.mubr.bf16.gmra.mrb[0].mxu0 %v578
    %v1445 = vpop.f32.mrb[0].mxu0
    %v1446 = vadd.f32 %v1405, %v1445
    %v1447 = vpop.f32.mrb[0].mxu0
    %v1448 = vadd.f32 %v1407, %v1447
    %v1449 = vpop.f32.mrb[0].mxu0
    %v1450 = vpop.f32.mrb[0].mxu0
    %1451 = vdwg.mxu0
    %1452 = vmatprep.subr.bf16.mxu0 %v1117
    %1453 = vmatpush1.bf16.msra.mxu0 %v1116
    %1454 = vmatprep.subr.bf16.mxu0 %v1121
    %1455 = vmatpush1.bf16.msra.mxu0 %v1120
    %1456 = vmatprep.subr.bf16.mxu0 %v1125
    %1457 = vmatpush1.bf16.msra.mxu0 %v1124
    %1458 = vmatprep.subr.bf16.mxu0 %v1129
    %1459 = vmatpush1.bf16.msra.mxu0 %v1128
    %1460 = vmatprep.subr.bf16.mxu0 %v1133
    %1461 = vmatpush1.bf16.msra.mxu0 %v1132
    %1462 = vmatprep.subr.bf16.mxu0 %v1137
    %1463 = vmatpush1.bf16.msra.mxu0 %v1136
    %1464 = vmatprep.subr.bf16.mxu0 %v1141
    %1465 = vmatpush1.bf16.msra.mxu0 %v1140
    %1466 = vmatprep.subr.bf16.mxu0 %v1145
    %1467 = vmatpush1.bf16.msra.mxu0 %v1144
    %1468 = vmatprep.subr.bf16.mxu0 %v1149
    %1469 = vmatpush1.bf16.msra.mxu0 %v1148
    %1470 = vmatprep.subr.bf16.mxu0 %v1153
    %1471 = vmatpush1.bf16.msra.mxu0 %v1152
    %1472 = vmatprep.subr.bf16.mxu0 %v1157
    %1473 = vmatpush1.bf16.msra.mxu0 %v1156
    %1474 = vmatprep.subr.bf16.mxu0 %v1161
    %1475 = vmatpush1.bf16.msra.mxu0 %v1160
    %1476 = vmatprep.subr.bf16.mxu0 %v1165
    %1477 = vmatpush1.bf16.msra.mxu0 %v1164
    %1478 = vmatprep.subr.bf16.mxu0 %v1169
    %1479 = vmatpush1.bf16.msra.mxu0 %v1168
    %1480 = vmatprep.subr.bf16.mxu0 %v1173
    %1481 = vmatpush1.bf16.msra.mxu0 %v1172
    %1482 = vmatprep.subr.bf16.mxu0 %v1177
    %1483 = vmatpush1.bf16.msra.mxu0 %v1176
    %1484 = vmatprep.mubr.bf16.mxu0 %v577
    %1485 = vmatmul.mubr.bf16.gmra.mrb[0].mxu0 %v576
    %v1486 = vpop.f32.mrb[0].mxu0
    %v1487 = vadd.f32 %v721, %v1486
    %v1488 = vpop.f32.mrb[0].mxu0
    %v1489 = vadd.f32 %v725, %v1488
    %v1490 = vpop.f32.mrb[0].mxu0
    %v1491 = vpop.f32.mrb[0].mxu0
    %1492 = vdwg.mxu0
    %1493 = vmatprep.subr.bf16.mxu0 %v1181
    %1494 = vmatpush1.bf16.msra.mxu0 %v1180
    %1495 = vmatprep.subr.bf16.mxu0 %v1185
    %1496 = vmatpush1.bf16.msra.mxu0 %v1184
    %1497 = vmatprep.subr.bf16.mxu0 %v1189
    %1498 = vmatpush1.bf16.msra.mxu0 %v1188
    %1499 = vmatprep.subr.bf16.mxu0 %v1193
    %1500 = vmatpush1.bf16.msra.mxu0 %v1192
    %1501 = vmatprep.subr.bf16.mxu0 %v1197
    %1502 = vmatpush1.bf16.msra.mxu0 %v1196
    %1503 = vmatprep.subr.bf16.mxu0 %v1201
    %1504 = vmatpush1.bf16.msra.mxu0 %v1200
    %1505 = vmatprep.subr.bf16.mxu0 %v1205
    %1506 = vmatpush1.bf16.msra.mxu0 %v1204
    %1507 = vmatprep.subr.bf16.mxu0 %v1209
    %1508 = vmatpush1.bf16.msra.mxu0 %v1208
    %1509 = vmatprep.subr.bf16.mxu0 %v1213
    %1510 = vmatpush1.bf16.msra.mxu0 %v1212
    %1511 = vmatprep.subr.bf16.mxu0 %v1217
    %1512 = vmatpush1.bf16.msra.mxu0 %v1216
    %1513 = vmatprep.subr.bf16.mxu0 %v1221
    %1514 = vmatpush1.bf16.msra.mxu0 %v1220
    %1515 = vmatprep.subr.bf16.mxu0 %v1225
    %1516 = vmatpush1.bf16.msra.mxu0 %v1224
    %1517 = vmatprep.subr.bf16.mxu0 %v1229
    %1518 = vmatpush1.bf16.msra.mxu0 %v1228
    %1519 = vmatprep.subr.bf16.mxu0 %v1233
    %1520 = vmatpush1.bf16.msra.mxu0 %v1232
    %1521 = vmatprep.subr.bf16.mxu0 %v1237
    %1522 = vmatpush1.bf16.msra.mxu0 %v1236
    %1523 = vmatprep.subr.bf16.mxu0 %v1241
    %1524 = vmatpush1.bf16.msra.mxu0 %v1240
    %1525 = vmatprep.mubr.bf16.mxu0 %v579
    %1526 = vmatmul.mubr.bf16.gmra.mrb[0].mxu0 %v578
    %v1527 = vpop.f32.mrb[0].mxu0
    %v1528 = vadd.f32 %v1487, %v1527
    %v1529 = vpop.f32.mrb[0].mxu0
    %v1530 = vadd.f32 %v1489, %v1529
    %v1531 = vpop.f32.mrb[0].mxu0
    %v1532 = vpop.f32.mrb[0].mxu0
    %1533 = vdwg.mxu0
    %v1534 = vxor.u32 %v1446, 2147483648
    %v1535 = vxor.u32 %v1448, 2147483648
    %v1536 = vxor.u32 %v1528, 2147483648
    %v1537 = vxor.u32 %v1530, 2147483648
    %v1538 = vmul.f32 %v1534, 1.442695
    %v1539 = vpow.pop %v1538
    %v1540 = vmul.f32 %v1535, 1.442695
    %v1541 = vpow.pop %v1540
    %v1542 = vmul.f32 %v1536, 1.442695
    %v1543 = vpow.pop %v1542
    %v1544 = vmul.f32 %v1537, 1.442695
    %v1545 = vpow.pop %v1544
    %v1546 = vadd.f32 %v1539, 1.0
    %v1547 = vadd.f32 %v1541, 1.0
    %v1548 = vadd.f32 %v1543, 1.0
    %v1549 = vadd.f32 %v1545, 1.0
    %v1550 = vrcp.pop %v1546
    %v1551 = vmul.f32 1.0, %v1550
    %v1552 = vrcp.pop %v1547
    %v1553 = vmul.f32 1.0, %v1552
    %v1554 = vrcp.pop %v1548
    %v1555 = vmul.f32 1.0, %v1554
    %v1556 = vrcp.pop %v1549
    %v1557 = vmul.f32 1.0, %v1556
    %v1558 = vmul.f32 %v1446, %v1551
    %v1559 = vmul.f32 %v1448, %v1553
    %v1560 = vmul.f32 %v1528, %v1555
    %v1561 = vmul.f32 %v1530, %v1557
    %1562 = vst [vmem:[#allocation8] sm:$0xff] %v1558
    %1563 = vst [vmem:[#allocation8 + $0x8] sm:$0xff] %v1559
    %1564 = vst [vmem:[#allocation8 + $0x10] sm:$0xff] %v1560
    %1565 = vst [vmem:[#allocation8 + $0x18] sm:$0xff] %v1561
    // Predicated region
    $region46: #{tpu_custom_call.1} parent=1 // pred_check
      _
    $region47: #{tpu_custom_call.1} parent=1 // pred_check_branch
      %1567 = sbr.rel (0) target = $region49
    $region48: #{tpu_custom_call.1} parent=1 // pred_region
      %s1569 = ssub.s32 512, 512
      %1570 = vsyncadd [#allocation4], %s1569
      %s1572 = sshll.u32 [#allocation8], 4
      %s1573 = int_to_ptr.vmem [resolvable:$true] %s1572
      %1575 = dma.vmem_to_hbm [thread:$0]  %s1573, 512, %s8, [#allocation4]
    $region49: #{tpu_custom_call.1} parent=1 // pred_fallthru
      _
    // Predicated region
    $region50: #{tpu_custom_call.1} parent=1 // pred_check
      _
    $region51: #{tpu_custom_call.1} parent=1 // pred_check_branch
      %1577 = sbr.rel (0) target = $region53
    $region52: #{tpu_custom_call.1} parent=1 // pred_region
      %1578 = dma.done [#allocation4], 512
    $region53: #{tpu_custom_call.1} parent=1 // pred_fallthru
      _
    %1579 = vsyncpa [#allocation3], 1
    %1580 = vsyncpa [#allocation6], 1
    %1581 = vsyncpa [#allocation4], 1

</llo_original>
